<compile_context>
chip_gen: v5e
topology: v5e:2x2
jax: 0.10.0
libtpu: 0.0.40
codegen_flags: <defaults>
</compile_context>

<pallas_src>
import jax
import jax.numpy as jnp
from jax.experimental import pallas as pl
from jax.experimental.pallas import tpu as pltpu

IN_F, HID, OUT_F = 1, 7, 2
LANE = 128        # lane width; flattened batch maps to (rows, LANE)
SUB = 8           # sublane multiple for the row (batch) dim
TILE_R = 2048     # rows per grid step: 1 MiB in + 2 MiB out per tile,
                  # ~6 MiB double-buffered -> fits v5e/v6e/v7x scoped VMEM.

# packed-parameter layout inside the (32,) f32 SMEM vector
_W1_OFF = 0                      # w1[j]          j = 0..6
_B1_OFF = HID                    # b1[j]
_W2_OFF = 2 * HID                # w2[j, c] at 2*HID + OUT_F*j + c
_B2_OFF = 2 * HID + HID * OUT_F  # b2[c]
_P_LEN = 32


def _round_up(a, m):
    return ((a + m - 1) // m) * m


def mlp_kernel(p_ref, x_ref, o_ref):
    # p_ref: SMEM (32,) f32 packed params
    # x_ref: VMEM (tile_r, 128) f32 — lane-dense slab of the flattened batch
    # o_ref: VMEM (OUT_F, tile_r, 128) — one lane-dense slab per class
    x = x_ref[...]
    # j = 0 term also carries the output bias: no zero-slab init, two fewer
    # vector adds per tile on the VALU-bound v6e/v7x path.
    h = jnp.maximum(x * p_ref[_W1_OFF] + p_ref[_B1_OFF], 0.0)
    out0 = h * p_ref[_W2_OFF + 0] + p_ref[_B2_OFF + 0]
    out1 = h * p_ref[_W2_OFF + 1] + p_ref[_B2_OFF + 1]
    # Unrolled over the remaining 6 hidden units: pure VPU broadcast mul/add/max.
    for j in range(1, HID):
        h = jnp.maximum(x * p_ref[_W1_OFF + j] + p_ref[_B1_OFF + j], 0.0)
        out0 = out0 + h * p_ref[_W2_OFF + OUT_F * j + 0]
        out1 = out1 + h * p_ref[_W2_OFF + OUT_F * j + 1]
    o_ref[0] = out0.astype(o_ref.dtype)
    o_ref[1] = out1.astype(o_ref.dtype)


def init_params(key):
    """Deterministic init mirroring nn.Linear default (uniform +-1/sqrt(fan_in))."""
    k1, k2, k3, k4 = jax.random.split(key, 4)
    bound1 = 1.0 / jnp.sqrt(IN_F)
    w1 = jax.random.uniform(k1, (IN_F, HID), jnp.float32, -bound1, bound1)
    b1 = jax.random.uniform(k2, (HID,), jnp.float32, -bound1, bound1)
    bound2 = 1.0 / jnp.sqrt(HID)
    w2 = jax.random.uniform(k3, (HID, OUT_F), jnp.float32, -bound2, bound2)
    b2 = jax.random.uniform(k4, (OUT_F,), jnp.float32, -bound2, bound2)
    return w1, b1, w2, b2


def _pack_params(params):
    w1, b1, w2, b2 = params
    p = jnp.zeros((_P_LEN,), jnp.float32)
    p = p.at[_W1_OFF:_W1_OFF + HID].set(w1.reshape(-1).astype(jnp.float32))
    p = p.at[_B1_OFF:_B1_OFF + HID].set(b1.reshape(-1).astype(jnp.float32))
    p = p.at[_W2_OFF:_W2_OFF + HID * OUT_F].set(w2.reshape(-1).astype(jnp.float32))
    p = p.at[_B2_OFF:_B2_OFF + OUT_F].set(b2.reshape(-1).astype(jnp.float32))
    return p


def _bucket_rows(n):
    """Bucketed row count: powers of two up to TILE_R, then TILE_R multiples.

    Bounds the padded tail (<= 1 MiB or <= 2x for tiny inputs) while letting
    variable-N callers reuse compiled pallas_call signatures.
    """
    rows = max(1, pl.cdiv(n, LANE))
    if rows <= TILE_R:
        return max(SUB, pl.next_power_of_2(rows))
    return _round_up(rows, TILE_R)


def neural_network_forward(x, params, *, out_dtype=jnp.float32, class_major=False):
    # torch: x.reshape(1, -1).t() -> flatten in row-major order, one row per element.
    x_flat = x.reshape(-1).astype(jnp.float32)
    n = x_flat.shape[0]

    rows_b = _bucket_rows(n)
    n_pad = rows_b * LANE

    # Lane-dense layout: element i lives at (row i // 128, lane i % 128).
    if n == n_pad:
        x_p = x_flat.reshape(rows_b, LANE)                 # zero-copy bitcast
    else:
        # Single pad op touching only the (bounded) tail-padded buffer; no
        # zeros+scatter rewrite of the whole input.
        x_p = jnp.pad(x_flat, (0, n_pad - n)).reshape(rows_b, LANE)

    # Keep >= 2 grid steps when there is enough work so both v7x TensorCores
    # are used; harmless on single-TC v5e/v6e.
    if rows_b >= 2 * SUB:
        tile_r = min(TILE_R, rows_b // 2)
    else:
        tile_r = rows_b
    grid_r = rows_b // tile_r

    p_vec = _pack_params(params)

    out_p = pl.pallas_call(
        mlp_kernel,
        out_shape=jax.ShapeDtypeStruct((OUT_F, rows_b, LANE), out_dtype),
        grid=(grid_r,),
        in_specs=[
            pl.BlockSpec(memory_space=pltpu.MemorySpace.SMEM),   # 32 packed scalars
            pl.BlockSpec((tile_r, LANE), lambda i: (i, 0)),      # batch tile
        ],
        out_specs=pl.BlockSpec((OUT_F, tile_r, LANE), lambda i: (0, i, 0)),
        compiler_params=pltpu.CompilerParams(
            dimension_semantics=("parallel",)),
    )(p_vec, x_p)

    # (2, n_pad) -> keep the first n flat elements.  Padded rows (which carry
    # relu(b1)@w2 + b2 garbage) are sliced off here — never consume out_p
    # before this slice.
    logits_cm = out_p.reshape(OUT_F, n_pad)[:, :n]
    if class_major:
        return logits_cm      # (2, N): lane-friendly, skips the transpose pass
    return logits_cm.T        # (N, 2): matches the torch module's output


def _reference_forward(x, params):
    w1, b1, w2, b2 = params
    x_col = x.reshape(1, -1).T.astype(jnp.float32)
    h = jnp.maximum(x_col @ w1 + b1, 0.0)
    return h @ w2 + b2


if __name__ == "__main__":
    key = jax.random.PRNGKey(0)
    k_params, k_x1, k_x2 = jax.random.split(key, 3)

    params = init_params(k_params)

    # Case 1: tiny 1-D input (seq=8) — single grid step.
    x1 = jax.random.normal(k_x1, (8,), dtype=jnp.float32)
    logits1 = jax.block_until_ready(neural_network_forward(x1, params))
    ref1 = _reference_forward(x1, params)
    assert logits1.shape == (8, OUT_F)
    assert jnp.allclose(logits1, ref1, atol=1e-5, rtol=1e-5)

    # Case 2: small NCHW-style batch (2,4,16,16) = 2048 elems — exercises the
    # zero-copy reshape path and a 2-step grid (both v7x TCs).
    x2 = jax.random.normal(k_x2, (2, 4, 16, 16), dtype=jnp.float32)
    logits2 = jax.block_until_ready(neural_network_forward(x2, params))
    ref2 = _reference_forward(x2, params)
    assert logits2.shape == (2 * 4 * 16 * 16, OUT_F)
    assert jnp.allclose(logits2, ref2, atol=1e-5, rtol=1e-5)

    print("KERNEL_OK")
</pallas_src>

<mosaic_0001>
module attributes {stable_mosaic.version = 11 : i64} {
  func.func @mlp_kernel(%arg0: i32, %arg1: memref<32xf32, #tpu.memory_space<smem>>, %arg2: memref<8x128xf32, #tpu.memory_space<vmem>>, %arg3: memref<2x8x128xf32, #tpu.memory_space<vmem>>) attributes {dimension_semantics = [#tpu.dimension_semantics<parallel>], iteration_bounds = array<i64: 1>, scalar_prefetch = 0 : i64, scratch_operands = 0 : i64, tpu.core_type = #tpu.core_type<tc>, window_params = [{transform_indices = @transform_0, window_bounds = array<i64: 32>}, {transform_indices = @transform_1, window_bounds = array<i64: 8, 128>}, {transform_indices = @transform_2, window_bounds = array<i64: 2, 8, 128>}]} {
    %c0 = arith.constant 0 : index
    %c0_0 = arith.constant 0 : index
    %0 = vector.load %arg2[%c0, %c0_0] : memref<8x128xf32, #tpu.memory_space<vmem>>, vector<8x128xf32>
    %c0_1 = arith.constant 0 : index
    %1 = memref.load %arg1[%c0_1] : memref<32xf32, #tpu.memory_space<smem>>
    %2 = vector.broadcast %1 : f32 to vector<8x128xf32>
    %3 = arith.mulf %0, %2 : vector<8x128xf32>
    %c7 = arith.constant 7 : index
    %4 = memref.load %arg1[%c7] : memref<32xf32, #tpu.memory_space<smem>>
    %5 = vector.broadcast %4 : f32 to vector<8x128xf32>
    %6 = arith.addf %3, %5 : vector<8x128xf32>
    %cst = arith.constant 0.000000e+00 : f32
    %7 = vector.broadcast %cst : f32 to vector<8x128xf32>
    %8 = arith.maximumf %6, %7 : vector<8x128xf32>
    %c14 = arith.constant 14 : index
    %9 = memref.load %arg1[%c14] : memref<32xf32, #tpu.memory_space<smem>>
    %10 = vector.broadcast %9 : f32 to vector<8x128xf32>
    %11 = arith.mulf %8, %10 : vector<8x128xf32>
    %c28 = arith.constant 28 : index
    %12 = memref.load %arg1[%c28] : memref<32xf32, #tpu.memory_space<smem>>
    %13 = vector.broadcast %12 : f32 to vector<8x128xf32>
    %14 = arith.addf %11, %13 : vector<8x128xf32>
    %c15 = arith.constant 15 : index
    %15 = memref.load %arg1[%c15] : memref<32xf32, #tpu.memory_space<smem>>
    %16 = vector.broadcast %15 : f32 to vector<8x128xf32>
    %17 = arith.mulf %8, %16 : vector<8x128xf32>
    %c29 = arith.constant 29 : index
    %18 = memref.load %arg1[%c29] : memref<32xf32, #tpu.memory_space<smem>>
    %19 = vector.broadcast %18 : f32 to vector<8x128xf32>
    %20 = arith.addf %17, %19 : vector<8x128xf32>
    %c1 = arith.constant 1 : index
    %21 = memref.load %arg1[%c1] : memref<32xf32, #tpu.memory_space<smem>>
    %22 = vector.broadcast %21 : f32 to vector<8x128xf32>
    %23 = arith.mulf %0, %22 : vector<8x128xf32>
    %c8 = arith.constant 8 : index
    %24 = memref.load %arg1[%c8] : memref<32xf32, #tpu.memory_space<smem>>
    %25 = vector.broadcast %24 : f32 to vector<8x128xf32>
    %26 = arith.addf %23, %25 : vector<8x128xf32>
    %cst_2 = arith.constant 0.000000e+00 : f32
    %27 = vector.broadcast %cst_2 : f32 to vector<8x128xf32>
    %28 = arith.maximumf %26, %27 : vector<8x128xf32>
    %c16 = arith.constant 16 : index
    %29 = memref.load %arg1[%c16] : memref<32xf32, #tpu.memory_space<smem>>
    %30 = vector.broadcast %29 : f32 to vector<8x128xf32>
    %31 = arith.mulf %28, %30 : vector<8x128xf32>
    %32 = arith.addf %14, %31 : vector<8x128xf32>
    %c17 = arith.constant 17 : index
    %33 = memref.load %arg1[%c17] : memref<32xf32, #tpu.memory_space<smem>>
    %34 = vector.broadcast %33 : f32 to vector<8x128xf32>
    %35 = arith.mulf %28, %34 : vector<8x128xf32>
    %36 = arith.addf %20, %35 : vector<8x128xf32>
    %c2 = arith.constant 2 : index
    %37 = memref.load %arg1[%c2] : memref<32xf32, #tpu.memory_space<smem>>
    %38 = vector.broadcast %37 : f32 to vector<8x128xf32>
    %39 = arith.mulf %0, %38 : vector<8x128xf32>
    %c9 = arith.constant 9 : index
    %40 = memref.load %arg1[%c9] : memref<32xf32, #tpu.memory_space<smem>>
    %41 = vector.broadcast %40 : f32 to vector<8x128xf32>
    %42 = arith.addf %39, %41 : vector<8x128xf32>
    %cst_3 = arith.constant 0.000000e+00 : f32
    %43 = vector.broadcast %cst_3 : f32 to vector<8x128xf32>
    %44 = arith.maximumf %42, %43 : vector<8x128xf32>
    %c18 = arith.constant 18 : index
    %45 = memref.load %arg1[%c18] : memref<32xf32, #tpu.memory_space<smem>>
    %46 = vector.broadcast %45 : f32 to vector<8x128xf32>
    %47 = arith.mulf %44, %46 : vector<8x128xf32>
    %48 = arith.addf %32, %47 : vector<8x128xf32>
    %c19 = arith.constant 19 : index
    %49 = memref.load %arg1[%c19] : memref<32xf32, #tpu.memory_space<smem>>
    %50 = vector.broadcast %49 : f32 to vector<8x128xf32>
    %51 = arith.mulf %44, %50 : vector<8x128xf32>
    %52 = arith.addf %36, %51 : vector<8x128xf32>
    %c3 = arith.constant 3 : index
    %53 = memref.load %arg1[%c3] : memref<32xf32, #tpu.memory_space<smem>>
    %54 = vector.broadcast %53 : f32 to vector<8x128xf32>
    %55 = arith.mulf %0, %54 : vector<8x128xf32>
    %c10 = arith.constant 10 : index
    %56 = memref.load %arg1[%c10] : memref<32xf32, #tpu.memory_space<smem>>
    %57 = vector.broadcast %56 : f32 to vector<8x128xf32>
    %58 = arith.addf %55, %57 : vector<8x128xf32>
    %cst_4 = arith.constant 0.000000e+00 : f32
    %59 = vector.broadcast %cst_4 : f32 to vector<8x128xf32>
    %60 = arith.maximumf %58, %59 : vector<8x128xf32>
    %c20 = arith.constant 20 : index
    %61 = memref.load %arg1[%c20] : memref<32xf32, #tpu.memory_space<smem>>
    %62 = vector.broadcast %61 : f32 to vector<8x128xf32>
    %63 = arith.mulf %60, %62 : vector<8x128xf32>
    %64 = arith.addf %48, %63 : vector<8x128xf32>
    %c21 = arith.constant 21 : index
    %65 = memref.load %arg1[%c21] : memref<32xf32, #tpu.memory_space<smem>>
    %66 = vector.broadcast %65 : f32 to vector<8x128xf32>
    %67 = arith.mulf %60, %66 : vector<8x128xf32>
    %68 = arith.addf %52, %67 : vector<8x128xf32>
    %c4 = arith.constant 4 : index
    %69 = memref.load %arg1[%c4] : memref<32xf32, #tpu.memory_space<smem>>
    %70 = vector.broadcast %69 : f32 to vector<8x128xf32>
    %71 = arith.mulf %0, %70 : vector<8x128xf32>
    %c11 = arith.constant 11 : index
    %72 = memref.load %arg1[%c11] : memref<32xf32, #tpu.memory_space<smem>>
    %73 = vector.broadcast %72 : f32 to vector<8x128xf32>
    %74 = arith.addf %71, %73 : vector<8x128xf32>
    %cst_5 = arith.constant 0.000000e+00 : f32
    %75 = vector.broadcast %cst_5 : f32 to vector<8x128xf32>
    %76 = arith.maximumf %74, %75 : vector<8x128xf32>
    %c22 = arith.constant 22 : index
    %77 = memref.load %arg1[%c22] : memref<32xf32, #tpu.memory_space<smem>>
    %78 = vector.broadcast %77 : f32 to vector<8x128xf32>
    %79 = arith.mulf %76, %78 : vector<8x128xf32>
    %80 = arith.addf %64, %79 : vector<8x128xf32>
    %c23 = arith.constant 23 : index
    %81 = memref.load %arg1[%c23] : memref<32xf32, #tpu.memory_space<smem>>
    %82 = vector.broadcast %81 : f32 to vector<8x128xf32>
    %83 = arith.mulf %76, %82 : vector<8x128xf32>
    %84 = arith.addf %68, %83 : vector<8x128xf32>
    %c5 = arith.constant 5 : index
    %85 = memref.load %arg1[%c5] : memref<32xf32, #tpu.memory_space<smem>>
    %86 = vector.broadcast %85 : f32 to vector<8x128xf32>
    %87 = arith.mulf %0, %86 : vector<8x128xf32>
    %c12 = arith.constant 12 : index
    %88 = memref.load %arg1[%c12] : memref<32xf32, #tpu.memory_space<smem>>
    %89 = vector.broadcast %88 : f32 to vector<8x128xf32>
    %90 = arith.addf %87, %89 : vector<8x128xf32>
    %cst_6 = arith.constant 0.000000e+00 : f32
    %91 = vector.broadcast %cst_6 : f32 to vector<8x128xf32>
    %92 = arith.maximumf %90, %91 : vector<8x128xf32>
    %c24 = arith.constant 24 : index
    %93 = memref.load %arg1[%c24] : memref<32xf32, #tpu.memory_space<smem>>
    %94 = vector.broadcast %93 : f32 to vector<8x128xf32>
    %95 = arith.mulf %92, %94 : vector<8x128xf32>
    %96 = arith.addf %80, %95 : vector<8x128xf32>
    %c25 = arith.constant 25 : index
    %97 = memref.load %arg1[%c25] : memref<32xf32, #tpu.memory_space<smem>>
    %98 = vector.broadcast %97 : f32 to vector<8x128xf32>
    %99 = arith.mulf %92, %98 : vector<8x128xf32>
    %100 = arith.addf %84, %99 : vector<8x128xf32>
    %c6 = arith.constant 6 : index
    %101 = memref.load %arg1[%c6] : memref<32xf32, #tpu.memory_space<smem>>
    %102 = vector.broadcast %101 : f32 to vector<8x128xf32>
    %103 = arith.mulf %0, %102 : vector<8x128xf32>
    %c13 = arith.constant 13 : index
    %104 = memref.load %arg1[%c13] : memref<32xf32, #tpu.memory_space<smem>>
    %105 = vector.broadcast %104 : f32 to vector<8x128xf32>
    %106 = arith.addf %103, %105 : vector<8x128xf32>
    %cst_7 = arith.constant 0.000000e+00 : f32
    %107 = vector.broadcast %cst_7 : f32 to vector<8x128xf32>
    %108 = arith.maximumf %106, %107 : vector<8x128xf32>
    %c26 = arith.constant 26 : index
    %109 = memref.load %arg1[%c26] : memref<32xf32, #tpu.memory_space<smem>>
    %110 = vector.broadcast %109 : f32 to vector<8x128xf32>
    %111 = arith.mulf %108, %110 : vector<8x128xf32>
    %112 = arith.addf %96, %111 : vector<8x128xf32>
    %c27 = arith.constant 27 : index
    %113 = memref.load %arg1[%c27] : memref<32xf32, #tpu.memory_space<smem>>
    %114 = vector.broadcast %113 : f32 to vector<8x128xf32>
    %115 = arith.mulf %108, %114 : vector<8x128xf32>
    %116 = arith.addf %100, %115 : vector<8x128xf32>
    %c0_8 = arith.constant 0 : index
    %c0_9 = arith.constant 0 : index
    %c0_10 = arith.constant 0 : index
    %117 = vector.load %arg3[%c0_8, %c0_9, %c0_10] : memref<2x8x128xf32, #tpu.memory_space<vmem>>, vector<1x8x128xf32>
    %118 = vector.shape_cast %117 : vector<1x8x128xf32> to vector<8x128xf32>
    %119 = vector.shape_cast %112 : vector<8x128xf32> to vector<1x8x128xf32>
    tpu.vector_store %arg3[%c0_8, %c0_9, %c0_10], %119 {strides = array<i32>} : memref<2x8x128xf32, #tpu.memory_space<vmem>>, vector<1x8x128xf32>,
    %c1_11 = arith.constant 1 : index
    %c0_12 = arith.constant 0 : index
    %c0_13 = arith.constant 0 : index
    %120 = vector.load %arg3[%c1_11, %c0_12, %c0_13] : memref<2x8x128xf32, #tpu.memory_space<vmem>>, vector<1x8x128xf32>
    %121 = vector.shape_cast %120 : vector<1x8x128xf32> to vector<8x128xf32>
    %122 = vector.shape_cast %116 : vector<8x128xf32> to vector<1x8x128xf32>
    tpu.vector_store %arg3[%c1_11, %c0_12, %c0_13], %122 {strides = array<i32>} : memref<2x8x128xf32, #tpu.memory_space<vmem>>, vector<1x8x128xf32>,
    return
  }
  func.func @transform_0(%arg0: i32) -> i32 {
    %c0_i32 = arith.constant 0 : i32
    %c0_i32_0 = arith.constant 0 : i32
    return %c0_i32 : i32
  }
  func.func @transform_1(%arg0: i32) -> (i32, i32) {
    %c0_i32 = arith.constant 0 : i32
    %c0_i32_0 = arith.constant 0 : i32
    return %arg0, %c0_i32 : i32, i32
  }
  func.func @transform_2(%arg0: i32) -> (i32, i32, i32) {
    %c0_i32 = arith.constant 0 : i32
    %c0_i32_0 = arith.constant 0 : i32
    %c0_i32_1 = arith.constant 0 : i32
    return %c0_i32, %arg0, %c0_i32_0 : i32, i32, i32
  }
}

</mosaic_0001>

<llo_original>
// kernel: tpu_custom_call.1
$region0: #{tpu_custom_call.1}
  #allocation0 [shape = 'u32[]', space=smem, size = 0x4, offset = 0x4, fixed_abs, tag = 'smem constant byte address 0x4 - core index']
  #allocation1 [shape = 'u32[72,128]{1,0:T(1,128)}', space=vmem, size = 0x9000, scoped, tag = 'internal scratch']
  %s0 = inlined_call_operand.hbm [shape: f32[32], index: 0, kind: input, shape index: {}]
  %s1 = inlined_call_operand.hbm [shape: f32[8,128], index: 1, kind: input, shape index: {}]
  %s2 = inlined_call_operand.hbm [shape: f32[2,8,128], index: 2, kind: output, shape index: {}]
  %s3 = sld [smem:[#allocation0]]
  $region26: #{tpu_custom_call.1} parent=0
    _
  %s5 = ssub.s32 1, %s3
  %s6 = scalar_select 0, %s5, %s3
  $region1: #{tpu_custom_call.1} parent=0
    #allocation2 [shape = 'u8[512]{0}', space=smem, size = 0x200, scoped, tag = 'input window, operand 0, single buffered']
    #allocation3 [shape = 's32[1]{0}', space=sflag, size = 0x4, scoped, tag = 'scoped memory for tpu_custom_call.1']
    #allocation4 [shape = 's32[1]{0}', space=sflag, size = 0x4, scoped, tag = 'scoped memory for tpu_custom_call.1']
    #allocation5 [shape = 's32[1]{0}', space=sflag, size = 0x4, scoped, tag = 'scoped memory for tpu_custom_call.1']
    #allocation6 [shape = 'u8[4096]{0}', space=vmem, size = 0x1000, scoped, tag = 'input window, operand 1, single buffered']
    #allocation7 [shape = 'u8[8192]{0}', space=vmem, size = 0x2000, scoped, tag = 'output window, operand 0, single buffered']
    %7 = vsyncpa [#allocation5], 0
    %8 = vsyncpa [#allocation3], 0
    %9 = vsyncpa [#allocation4], 0
    // Predicated region
    $region2: #{tpu_custom_call.1} parent=1 // pred_check
      _
    $region3: #{tpu_custom_call.1} parent=1 // pred_check_branch
      %11 = sbr.rel (0) target = $region5
    $region4: #{tpu_custom_call.1} parent=1 // pred_region
      %13 = vsyncadd [#allocation5], 0
      %s15 = sshll.u32 %s0, 4
      %s16 = int_to_ptr.hbm [resolvable:$true] %s15
      %18 = dma.hbm_to_smem %s16, 16, [#allocation2], [#allocation5]
    $region5: #{tpu_custom_call.1} parent=1 // pred_fallthru
      _
    // Predicated region
    $region6: #{tpu_custom_call.1} parent=1 // pred_check
      _
    $region7: #{tpu_custom_call.1} parent=1 // pred_check_branch
      %20 = sbr.rel (0) target = $region9
    $region8: #{tpu_custom_call.1} parent=1 // pred_region
      %22 = vsyncadd [#allocation3], 0
      %s24 = sshll.u32 %s1, 4
      %s25 = int_to_ptr.hbm [resolvable:$true] %s24
      %s26 = sshll.u32 [#allocation6], 4
      %s27 = int_to_ptr.vmem [resolvable:$true] %s26
      %29 = dma.hbm_to_vmem [thread:$0]  %s25, 128, %s27, [#allocation3]
    $region9: #{tpu_custom_call.1} parent=1 // pred_fallthru
      _
    // Predicated region
    $region10: #{tpu_custom_call.1} parent=1 // pred_check
      _
    $region11: #{tpu_custom_call.1} parent=1 // pred_check_branch
      %31 = sbr.rel (0) target = $region13
    $region12: #{tpu_custom_call.1} parent=1 // pred_region
      %33 = dma.done [#allocation5], 16
    $region13: #{tpu_custom_call.1} parent=1 // pred_fallthru
      _
    // Predicated region
    $region14: #{tpu_custom_call.1} parent=1 // pred_check
      _
    $region15: #{tpu_custom_call.1} parent=1 // pred_check_branch
      %35 = sbr.rel (0) target = $region17
    $region16: #{tpu_custom_call.1} parent=1 // pred_region
      %37 = dma.done [#allocation3], 128
    $region17: #{tpu_custom_call.1} parent=1 // pred_fallthru
      _
    %38 = sfence
    %v39 = vld [vmem:[#allocation6] sm:$0xff]
    %s40 = sld [smem:[#allocation2]]
    %v41 = vstv %s40
    %v42 = vmul.f32 %v39, %v41
    %s43 = sld [smem:[#allocation2 + $0x7]]
    %v44 = vstv %s43
    %v45 = vadd.f32 %v42, %v44
    %v46 = vmax.f32 %v45, 0.0
    %s47 = sld [smem:[#allocation2 + $0xe]]
    %v48 = vstv %s47
    %v49 = vmul.f32 %v46, %v48
    %s50 = sld [smem:[#allocation2 + $0x1c]]
    %v51 = vstv %s50
    %v52 = vadd.f32 %v49, %v51
    %s53 = sld [smem:[#allocation2 + $0xf]]
    %v54 = vstv %s53
    %v55 = vmul.f32 %v46, %v54
    %s56 = sld [smem:[#allocation2 + $0x1d]]
    %v57 = vstv %s56
    %v58 = vadd.f32 %v55, %v57
    %s59 = sld [smem:[#allocation2 + $0x1]]
    %v60 = vstv %s59
    %v61 = vmul.f32 %v39, %v60
    %s62 = sld [smem:[#allocation2 + $0x8]]
    %v63 = vstv %s62
    %v64 = vadd.f32 %v61, %v63
    %v65 = vmax.f32 %v64, 0.0
    %s66 = sld [smem:[#allocation2 + $0x10]]
    %v67 = vstv %s66
    %v68 = vmul.f32 %v65, %v67
    %v69 = vadd.f32 %v52, %v68
    %s70 = sld [smem:[#allocation2 + $0x11]]
    %v71 = vstv %s70
    %v72 = vmul.f32 %v65, %v71
    %v73 = vadd.f32 %v58, %v72
    %s74 = sld [smem:[#allocation2 + $0x2]]
    %v75 = vstv %s74
    %v76 = vmul.f32 %v39, %v75
    %s77 = sld [smem:[#allocation2 + $0x9]]
    %v78 = vstv %s77
    %v79 = vadd.f32 %v76, %v78
    %v80 = vmax.f32 %v79, 0.0
    %s81 = sld [smem:[#allocation2 + $0x12]]
    %v82 = vstv %s81
    %v83 = vmul.f32 %v80, %v82
    %v84 = vadd.f32 %v69, %v83
    %s85 = sld [smem:[#allocation2 + $0x13]]
    %v86 = vstv %s85
    %v87 = vmul.f32 %v80, %v86
    %v88 = vadd.f32 %v73, %v87
    %s89 = sld [smem:[#allocation2 + $0x3]]
    %v90 = vstv %s89
    %v91 = vmul.f32 %v39, %v90
    %s92 = sld [smem:[#allocation2 + $0xa]]
    %v93 = vstv %s92
    %v94 = vadd.f32 %v91, %v93
    %v95 = vmax.f32 %v94, 0.0
    %s96 = sld [smem:[#allocation2 + $0x14]]
    %v97 = vstv %s96
    %v98 = vmul.f32 %v95, %v97
    %v99 = vadd.f32 %v84, %v98
    %s100 = sld [smem:[#allocation2 + $0x15]]
    %v101 = vstv %s100
    %v102 = vmul.f32 %v95, %v101
    %v103 = vadd.f32 %v88, %v102
    %s104 = sld [smem:[#allocation2 + $0x4]]
    %v105 = vstv %s104
    %v106 = vmul.f32 %v39, %v105
    %s107 = sld [smem:[#allocation2 + $0xb]]
    %v108 = vstv %s107
    %v109 = vadd.f32 %v106, %v108
    %v110 = vmax.f32 %v109, 0.0
    %s111 = sld [smem:[#allocation2 + $0x16]]
    %v112 = vstv %s111
    %v113 = vmul.f32 %v110, %v112
    %v114 = vadd.f32 %v99, %v113
    %s115 = sld [smem:[#allocation2 + $0x17]]
    %v116 = vstv %s115
    %v117 = vmul.f32 %v110, %v116
    %v118 = vadd.f32 %v103, %v117
    %s119 = sld [smem:[#allocation2 + $0x5]]
    %v120 = vstv %s119
    %v121 = vmul.f32 %v39, %v120
    %s122 = sld [smem:[#allocation2 + $0xc]]
    %v123 = vstv %s122
    %v124 = vadd.f32 %v121, %v123
    %v125 = vmax.f32 %v124, 0.0
    %s126 = sld [smem:[#allocation2 + $0x18]]
    %v127 = vstv %s126
    %v128 = vmul.f32 %v125, %v127
    %v129 = vadd.f32 %v114, %v128
    %s130 = sld [smem:[#allocation2 + $0x19]]
    %v131 = vstv %s130
    %v132 = vmul.f32 %v125, %v131
    %v133 = vadd.f32 %v118, %v132
    %s134 = sld [smem:[#allocation2 + $0x6]]
    %v135 = vstv %s134
    %v136 = vmul.f32 %v39, %v135
    %s137 = sld [smem:[#allocation2 + $0xd]]
    %v138 = vstv %s137
    %v139 = vadd.f32 %v136, %v138
    %v140 = vmax.f32 %v139, 0.0
    %s141 = sld [smem:[#allocation2 + $0x1a]]
    %v142 = vstv %s141
    %v143 = vmul.f32 %v140, %v142
    %v144 = vadd.f32 %v129, %v143
    %s145 = sld [smem:[#allocation2 + $0x1b]]
    %v146 = vstv %s145
    %v147 = vmul.f32 %v140, %v146
    %v148 = vadd.f32 %v133, %v147
    %149 = vst [vmem:[#allocation7] sm:$0xff] %v144
    %s150 = scalar_lea.vmem [#allocation7], 8
    %151 = vst [vmem:[%s150] sm:$0xff] %v148
    // Predicated region
    $region18: #{tpu_custom_call.1} parent=1 // pred_check
      _
    $region19: #{tpu_custom_call.1} parent=1 // pred_check_branch
      %153 = sbr.rel (0) target = $region21
    $region20: #{tpu_custom_call.1} parent=1 // pred_region
      %155 = vsyncadd [#allocation4], 0
      %s156 = sshll.u32 [#allocation7], 4
      %s157 = int_to_ptr.vmem [resolvable:$true] %s156
      %s158 = sshll.u32 %s2, 4
      %s159 = int_to_ptr.hbm [resolvable:$true] %s158
      %164 = dma.vmem_to_hbm [thread:$0]  %s157, 256, %s159, [#allocation4], 128, 128, 8
    $region21: #{tpu_custom_call.1} parent=1 // pred_fallthru
      _
    // Predicated region
    $region22: #{tpu_custom_call.1} parent=1 // pred_check
      _
    $region23: #{tpu_custom_call.1} parent=1 // pred_check_branch
      %166 = sbr.rel (0) target = $region25
    $region24: #{tpu_custom_call.1} parent=1 // pred_region
      %168 = dma.done [#allocation4], 256
    $region25: #{tpu_custom_call.1} parent=1 // pred_fallthru
      _
    %169 = vsyncpa [#allocation3], 1
    %170 = vsyncpa [#allocation4], 1
    %171 = vsyncpa [#allocation5], 1

</llo_original>
